<compile_context>
chip_gen: v7x
topology: tpu7x:2x2x1
jax: 0.10.0
libtpu: 0.0.40
codegen_flags: <defaults>
</compile_context>

<pallas_src>
import functools

import jax
import jax.numpy as jnp
import numpy as np
from jax.experimental import pallas as pl
from jax.experimental.pallas import tpu as pltpu

_LANE = 128
_SUBLANE = 8
_TARGET_TB = 1024  # target batch-tile rows


def _round_up(v: int, m: int) -> int:
    return ((v + m - 1) // m) * m


def _make_mlp_kernel(n_hidden_layers: int, negative_slope: float = 0.01):
    """Fused MLP kernel: (depth-1) x (linear + leaky-relu) + final linear.

    Refs: (x, w0, b0, w1, b1, ..., w_final, b_final, out).
    x is f32 (unpadded feature dim), weights bf16 (in_pad, out_pad), biases f32
    (1, out_pad); matmuls accumulate in f32; output cast to out_ref.dtype.
    """

    def kernel(x_ref, *refs):
        out_ref = refs[-1]
        params = refs[:-1]

        # f32 -> bf16 cast in-kernel (x crosses HBM->VMEM exactly once, unpadded).
        h = x_ref[...].astype(jnp.bfloat16)  # (TB, input_dim)
        for l in range(n_hidden_layers):
            w = params[2 * l][...]        # (in_pad, out_pad) bf16
            b = params[2 * l + 1][...]    # (1, out_pad) f32
            acc = jnp.dot(h, w, preferred_element_type=jnp.float32) + b
            acc = jnp.where(acc > 0, acc, negative_slope * acc)  # LeakyReLU in f32
            h = acc.astype(jnp.bfloat16)

        w = params[2 * n_hidden_layers][...]      # (out_dim_pad, nc_pad) bf16
        b = params[2 * n_hidden_layers + 1][...]  # (1, nc_pad) f32
        out_ref[...] = (
            jnp.dot(h, w, preferred_element_type=jnp.float32) + b
        ).astype(out_ref.dtype)

    return kernel


def init_latent_classifier_params(key, input_dim, output_dim, num_classes, depth):
    """Unpadded f32 params matching the PyTorch module's shapes.

    Conv2d(d_in, d_out, 1) weight (d_out, d_in, 1, 1) -> stored as (d_in, d_out).
    Linear(output_dim, num_classes) weight (num_classes, output_dim)
        -> stored as (output_dim, num_classes).  Biases stored as (1, d_out).
    """
    dims = np.linspace(input_dim, output_dim, depth).astype(int)  # same truncation as PyTorch
    params = []
    for l in range(len(dims) - 1):
        d_in, d_out = int(dims[l]), int(dims[l + 1])
        key, kw, kb = jax.random.split(key, 3)
        bound = 1.0 / np.sqrt(d_in)
        w = jax.random.uniform(kw, (d_in, d_out), jnp.float32, -bound, bound)
        b = jax.random.uniform(kb, (1, d_out), jnp.float32, -bound, bound)
        params += [w, b]
    key, kw, kb = jax.random.split(key, 3)
    bound = 1.0 / np.sqrt(output_dim)
    w = jax.random.uniform(kw, (output_dim, num_classes), jnp.float32, -bound, bound)
    b = jax.random.uniform(kb, (1, num_classes), jnp.float32, -bound, bound)
    params += [w, b]
    return dims, params


def prepare_params(params, input_dim):
    """One-time preparation: zero-pad every weight/bias to lane-aligned widths
    and cast weights to bf16.  Call once; pass the result to the forward so the
    per-call path never re-pads or re-casts parameters."""
    n_layers = len(params) // 2
    padded = []
    prev = input_dim  # layer-0 weight rows stay unpadded: they must match x's width
    for l in range(n_layers):
        w, b = params[2 * l], params[2 * l + 1]
        d_in, d_out = w.shape
        # v6e/v7x MXU result tiles are 256 wide; only pad that far for wide layers.
        lane = 256 if d_out >= 256 else _LANE
        do = _round_up(d_out, lane)
        di = prev
        w_p = jnp.zeros((di, do), jnp.bfloat16).at[:d_in, :d_out].set(
            w.astype(jnp.bfloat16))
        b_p = jnp.zeros((1, do), jnp.float32).at[:, :d_out].set(b.astype(jnp.float32))
        padded += [w_p, b_p]
        prev = do
    return tuple(padded)


@functools.partial(
    jax.jit, static_argnames=("num_classes", "out_dtype", "single_buffer_weights"))
def latent_classifier_forward(x, padded_params, *, num_classes,
                              out_dtype=jnp.float32, single_buffer_weights=True):
    """Runs the fused Pallas kernel.

    x: (B, input_dim) float32, unpadded.  (A (B, input_dim, 1, 1) input should be
    flattened by the caller, mirroring the module's squeeze semantics.)
    padded_params: output of prepare_params().
    """
    B, input_dim = x.shape
    n_layers = len(padded_params) // 2
    n_hidden_layers = n_layers - 1
    nc_pad = padded_params[-1].shape[1]

    # ---- batch tile: big enough to amortize per-step overhead, multiple of 8
    #      sublanes, and >= 2 grid steps when possible (v7x second TensorCore) ----
    if B > 2 * _TARGET_TB:
        tb = _TARGET_TB
    else:
        tb = _round_up(pl.cdiv(B, 2), _SUBLANE)
        if tb >= B:
            tb = B  # too small to split: single full-batch tile (full-dim exempt)
    grid = (pl.cdiv(B, tb),)

    # ---- specs: x / logits tiled over batch; weights & biases VMEM-resident ----
    in_specs = [pl.BlockSpec((tb, input_dim), lambda i: (i, 0))]
    for p in padded_params:
        if single_buffer_weights:
            # Constant index_map -> fetched once; single buffer halves weight VMEM.
            spec = pl.BlockSpec(p.shape, lambda i: (0, 0), pipeline_mode=pl.Buffered(1))
        else:
            spec = pl.BlockSpec(p.shape, lambda i: (0, 0))
        in_specs.append(spec)
    out_specs = pl.BlockSpec((tb, nc_pad), lambda i: (i, 0))

    # ---- VMEM budget from the actual footprint (v5e default scoped limit: 16 MiB) ----
    est = 2 * tb * input_dim * x.dtype.itemsize              # x, double-buffered
    est += 2 * tb * nc_pad * jnp.dtype(out_dtype).itemsize   # out, double-buffered
    wbuf = 1 if single_buffer_weights else 2
    for p in padded_params:
        est += wbuf * p.size * p.dtype.itemsize
    max_w = max(p.shape[-1] for p in padded_params[0::2])
    est += 8 * tb * max_w                                    # f32 + bf16 activation temps
    vmem_limit = int(min(max(2 * est + (4 << 20), 32 << 20), 60 << 20))

    kernel = _make_mlp_kernel(n_hidden_layers)
    out_p = pl.pallas_call(
        kernel,
        out_shape=jax.ShapeDtypeStruct((B, nc_pad), out_dtype),
        grid=grid,
        in_specs=in_specs,
        out_specs=out_specs,
        compiler_params=pltpu.CompilerParams(
            dimension_semantics=("parallel",),  # shard batch tiles across TCs (v7x)
            vmem_limit_bytes=vmem_limit,
        ),
    )(x, *padded_params)

    return out_p[:, :num_classes]


def _run_forward(x, padded_params, num_classes):
    """Thin driver: prefer single-buffered resident weights; fall back to the
    default double-buffered specs if this JAX build rejects pl.Buffered(1)."""
    try:
        out = latent_classifier_forward(
            x, padded_params, num_classes=num_classes, single_buffer_weights=True)
        return jax.block_until_ready(out)
    except Exception:
        out = latent_classifier_forward(
            x, padded_params, num_classes=num_classes, single_buffer_weights=False)
        return jax.block_until_ready(out)


def _reference_forward(x, params, n_hidden_layers):
    """Pure-JAX reference with the same bf16-operand / f32-accumulate recipe."""
    h = x.astype(jnp.bfloat16)
    for l in range(n_hidden_layers):
        w, b = params[2 * l], params[2 * l + 1]
        acc = jnp.dot(h, w.astype(jnp.bfloat16), preferred_element_type=jnp.float32) + b
        acc = jnp.where(acc > 0, acc, 0.01 * acc)
        h = acc.astype(jnp.bfloat16)
    w, b = params[2 * n_hidden_layers], params[2 * n_hidden_layers + 1]
    return jnp.dot(h, w.astype(jnp.bfloat16), preferred_element_type=jnp.float32) + b


if __name__ == "__main__":
    # Small shapes consistent with the module's forward.
    input_dim, output_dim, num_classes, depth = 32, 16, 8, 3

    key = jax.random.PRNGKey(0)
    key, kp = jax.random.split(key)
    dims, params = init_latent_classifier_params(
        kp, input_dim, output_dim, num_classes, depth)
    n_hidden_layers = len(dims) - 1  # number of (Conv2d + LeakyReLU) layers

    # One-time parameter padding/cast (hoisted out of the per-call path).
    padded = prepare_params(params, input_dim)

    # batch=8 -> single full tile; batch=20 -> 2 grid steps with a ragged last tile.
    for batch in (8, 20):
        key, kx = jax.random.split(key)
        x = jax.random.normal(kx, (batch, input_dim), jnp.float32)

        logits = _run_forward(x, padded, num_classes)
        ref = _reference_forward(x, params, n_hidden_layers)

        assert logits.shape == (batch, num_classes)
        np.testing.assert_allclose(np.asarray(logits), np.asarray(ref),
                                   rtol=1e-3, atol=1e-3)

    print("KERNEL_OK")
</pallas_src>

<mosaic_0001>
module attributes {stable_mosaic.version = 11 : i64} {
  func.func @kernel(%arg0: i32, %arg1: memref<8x32xf32, #tpu.memory_space<vmem>>, %arg2: memref<32x128xbf16, #tpu.memory_space<vmem>>, %arg3: memref<1x128xf32, #tpu.memory_space<vmem>>, %arg4: memref<128x128xbf16, #tpu.memory_space<vmem>>, %arg5: memref<1x128xf32, #tpu.memory_space<vmem>>, %arg6: memref<128x128xbf16, #tpu.memory_space<vmem>>, %arg7: memref<1x128xf32, #tpu.memory_space<vmem>>, %arg8: memref<8x128xf32, #tpu.memory_space<vmem>>) attributes {dimension_semantics = [#tpu.dimension_semantics<parallel>], iteration_bounds = array<i64: 1>, scalar_prefetch = 0 : i64, scratch_operands = 0 : i64, tpu.core_type = #tpu.core_type<tc>, window_params = [{transform_indices = @transform_0, window_bounds = array<i64: 8, 32>}, {pipeline_mode = #tpu.pipeline_mode<synchronous>, transform_indices = @transform_1, window_bounds = array<i64: 32, 128>}, {pipeline_mode = #tpu.pipeline_mode<synchronous>, transform_indices = @transform_2, window_bounds = array<i64: 1, 128>}, {pipeline_mode = #tpu.pipeline_mode<synchronous>, transform_indices = @transform_3, window_bounds = array<i64: 128, 128>}, {pipeline_mode = #tpu.pipeline_mode<synchronous>, transform_indices = @transform_4, window_bounds = array<i64: 1, 128>}, {pipeline_mode = #tpu.pipeline_mode<synchronous>, transform_indices = @transform_5, window_bounds = array<i64: 128, 128>}, {pipeline_mode = #tpu.pipeline_mode<synchronous>, transform_indices = @transform_6, window_bounds = array<i64: 1, 128>}, {transform_indices = @transform_7, window_bounds = array<i64: 8, 128>}]} {
    %c0 = arith.constant 0 : index
    %c0_0 = arith.constant 0 : index
    %0 = vector.load %arg1[%c0, %c0_0] : memref<8x32xf32, #tpu.memory_space<vmem>>, vector<8x32xf32>
    %1 = arith.truncf %0 : vector<8x32xf32> to vector<8x32xbf16>
    %c0_1 = arith.constant 0 : index
    %c0_2 = arith.constant 0 : index
    %2 = vector.load %arg2[%c0_1, %c0_2] : memref<32x128xbf16, #tpu.memory_space<vmem>>, vector<32x128xbf16>
    %c0_3 = arith.constant 0 : index
    %c0_4 = arith.constant 0 : index
    %3 = vector.load %arg3[%c0_3, %c0_4] : memref<1x128xf32, #tpu.memory_space<vmem>>, vector<1x128xf32>
    %cst = arith.constant dense<0.000000e+00> : vector<8x128xf32>
    %4 = tpu.matmul %1, %2, %cst {dimension_numbers = #tpu.dot_dimension_numbers<[1], [0], [0], [1], [0, 0, 1, 1], [], []>} : vector<8x32xbf16>, vector<32x128xbf16>, vector<8x128xf32> -> vector<8x128xf32>
    %5 = vector.broadcast %3 : vector<1x128xf32> to vector<8x128xf32>
    %6 = arith.addf %4, %5 : vector<8x128xf32>
    %cst_5 = arith.constant 0.000000e+00 : f32
    %7 = vector.broadcast %cst_5 : f32 to vector<8x128xf32>
    %8 = arith.cmpf ogt, %6, %7 : vector<8x128xf32>
    %cst_6 = arith.constant 0.00999999977 : f32
    %9 = vector.broadcast %cst_6 : f32 to vector<8x128xf32>
    %10 = arith.mulf %9, %6 : vector<8x128xf32>
    %11 = arith.select %8, %6, %10 : vector<8x128xi1>, vector<8x128xf32>
    %12 = arith.truncf %11 : vector<8x128xf32> to vector<8x128xbf16>
    %c0_7 = arith.constant 0 : index
    %c0_8 = arith.constant 0 : index
    %13 = vector.load %arg4[%c0_7, %c0_8] : memref<128x128xbf16, #tpu.memory_space<vmem>>, vector<128x128xbf16>
    %c0_9 = arith.constant 0 : index
    %c0_10 = arith.constant 0 : index
    %14 = vector.load %arg5[%c0_9, %c0_10] : memref<1x128xf32, #tpu.memory_space<vmem>>, vector<1x128xf32>
    %cst_11 = arith.constant dense<0.000000e+00> : vector<8x128xf32>
    %15 = tpu.matmul %12, %13, %cst_11 {dimension_numbers = #tpu.dot_dimension_numbers<[1], [0], [0], [1], [0, 0, 1, 1], [], []>} : vector<8x128xbf16>, vector<128x128xbf16>, vector<8x128xf32> -> vector<8x128xf32>
    %16 = vector.broadcast %14 : vector<1x128xf32> to vector<8x128xf32>
    %17 = arith.addf %15, %16 : vector<8x128xf32>
    %cst_12 = arith.constant 0.000000e+00 : f32
    %18 = vector.broadcast %cst_12 : f32 to vector<8x128xf32>
    %19 = arith.cmpf ogt, %17, %18 : vector<8x128xf32>
    %cst_13 = arith.constant 0.00999999977 : f32
    %20 = vector.broadcast %cst_13 : f32 to vector<8x128xf32>
    %21 = arith.mulf %20, %17 : vector<8x128xf32>
    %22 = arith.select %19, %17, %21 : vector<8x128xi1>, vector<8x128xf32>
    %23 = arith.truncf %22 : vector<8x128xf32> to vector<8x128xbf16>
    %c0_14 = arith.constant 0 : index
    %c0_15 = arith.constant 0 : index
    %24 = vector.load %arg6[%c0_14, %c0_15] : memref<128x128xbf16, #tpu.memory_space<vmem>>, vector<128x128xbf16>
    %c0_16 = arith.constant 0 : index
    %c0_17 = arith.constant 0 : index
    %25 = vector.load %arg7[%c0_16, %c0_17] : memref<1x128xf32, #tpu.memory_space<vmem>>, vector<1x128xf32>
    %cst_18 = arith.constant dense<0.000000e+00> : vector<8x128xf32>
    %26 = tpu.matmul %23, %24, %cst_18 {dimension_numbers = #tpu.dot_dimension_numbers<[1], [0], [0], [1], [0, 0, 1, 1], [], []>} : vector<8x128xbf16>, vector<128x128xbf16>, vector<8x128xf32> -> vector<8x128xf32>
    %27 = vector.broadcast %25 : vector<1x128xf32> to vector<8x128xf32>
    %28 = arith.addf %26, %27 : vector<8x128xf32>
    %c0_19 = arith.constant 0 : index
    %c0_20 = arith.constant 0 : index
    %29 = vector.load %arg8[%c0_19, %c0_20] : memref<8x128xf32, #tpu.memory_space<vmem>>, vector<8x128xf32>
    tpu.vector_store %arg8[%c0_19, %c0_20], %28 {strides = array<i32>} : memref<8x128xf32, #tpu.memory_space<vmem>>, vector<8x128xf32>,
    return
  }
  func.func @transform_0(%arg0: i32) -> (i32, i32) {
    %c0_i32 = arith.constant 0 : i32
    %c0_i32_0 = arith.constant 0 : i32
    return %arg0, %c0_i32 : i32, i32
  }
  func.func @transform_1(%arg0: i32) -> (i32, i32) {
    %c0_i32 = arith.constant 0 : i32
    %c0_i32_0 = arith.constant 0 : i32
    %c0_i32_1 = arith.constant 0 : i32
    return %c0_i32, %c0_i32_0 : i32, i32
  }
  func.func @transform_2(%arg0: i32) -> (i32, i32) {
    %c0_i32 = arith.constant 0 : i32
    %c0_i32_0 = arith.constant 0 : i32
    %c0_i32_1 = arith.constant 0 : i32
    return %c0_i32, %c0_i32_0 : i32, i32
  }
  func.func @transform_3(%arg0: i32) -> (i32, i32) {
    %c0_i32 = arith.constant 0 : i32
    %c0_i32_0 = arith.constant 0 : i32
    %c0_i32_1 = arith.constant 0 : i32
    return %c0_i32, %c0_i32_0 : i32, i32
  }
  func.func @transform_4(%arg0: i32) -> (i32, i32) {
    %c0_i32 = arith.constant 0 : i32
    %c0_i32_0 = arith.constant 0 : i32
    %c0_i32_1 = arith.constant 0 : i32
    return %c0_i32, %c0_i32_0 : i32, i32
  }
  func.func @transform_5(%arg0: i32) -> (i32, i32) {
    %c0_i32 = arith.constant 0 : i32
    %c0_i32_0 = arith.constant 0 : i32
    %c0_i32_1 = arith.constant 0 : i32
    return %c0_i32, %c0_i32_0 : i32, i32
  }
  func.func @transform_6(%arg0: i32) -> (i32, i32) {
    %c0_i32 = arith.constant 0 : i32
    %c0_i32_0 = arith.constant 0 : i32
    %c0_i32_1 = arith.constant 0 : i32
    return %c0_i32, %c0_i32_0 : i32, i32
  }
  func.func @transform_7(%arg0: i32) -> (i32, i32) {
    %c0_i32 = arith.constant 0 : i32
    %c0_i32_0 = arith.constant 0 : i32
    return %arg0, %c0_i32 : i32, i32
  }
}

module attributes {stable_mosaic.version = 11 : i64} {
  func.func @kernel(%arg0: i32, %arg1: memref<8x32xf32, #tpu.memory_space<vmem>>, %arg2: memref<32x128xbf16, #tpu.memory_space<vmem>>, %arg3: memref<1x128xf32, #tpu.memory_space<vmem>>, %arg4: memref<128x128xbf16, #tpu.memory_space<vmem>>, %arg5: memref<1x128xf32, #tpu.memory_space<vmem>>, %arg6: memref<128x128xbf16, #tpu.memory_space<vmem>>, %arg7: memref<1x128xf32, #tpu.memory_space<vmem>>, %arg8: memref<8x128xf32, #tpu.memory_space<vmem>>) attributes {dimension_semantics = [#tpu.dimension_semantics<parallel>], iteration_bounds = array<i64: 1>, scalar_prefetch = 0 : i64, scratch_operands = 0 : i64, tpu.core_type = #tpu.core_type<tc>, window_params = [{transform_indices = @transform_0, window_bounds = array<i64: 8, 32>}, {pipeline_mode = #tpu.pipeline_mode<synchronous>, transform_indices = @transform_1, window_bounds = array<i64: 32, 128>}, {pipeline_mode = #tpu.pipeline_mode<synchronous>, transform_indices = @transform_2, window_bounds = array<i64: 1, 128>}, {pipeline_mode = #tpu.pipeline_mode<synchronous>, transform_indices = @transform_3, window_bounds = array<i64: 128, 128>}, {pipeline_mode = #tpu.pipeline_mode<synchronous>, transform_indices = @transform_4, window_bounds = array<i64: 1, 128>}, {pipeline_mode = #tpu.pipeline_mode<synchronous>, transform_indices = @transform_5, window_bounds = array<i64: 128, 128>}, {pipeline_mode = #tpu.pipeline_mode<synchronous>, transform_indices = @transform_6, window_bounds = array<i64: 1, 128>}, {transform_indices = @transform_7, window_bounds = array<i64: 8, 128>}]} {
    %c0 = arith.constant 0 : index
    %c0_0 = arith.constant 0 : index
    %0 = vector.load %arg1[%c0, %c0_0] : memref<8x32xf32, #tpu.memory_space<vmem>>, vector<8x32xf32>
    %1 = arith.truncf %0 : vector<8x32xf32> to vector<8x32xbf16>
    %c0_1 = arith.constant 0 : index
    %c0_2 = arith.constant 0 : index
    %2 = vector.load %arg2[%c0_1, %c0_2] : memref<32x128xbf16, #tpu.memory_space<vmem>>, vector<32x128xbf16>
    %c0_3 = arith.constant 0 : index
    %c0_4 = arith.constant 0 : index
    %3 = vector.load %arg3[%c0_3, %c0_4] : memref<1x128xf32, #tpu.memory_space<vmem>>, vector<1x128xf32>
    %cst = arith.constant dense<0.000000e+00> : vector<8x128xf32>
    %4 = tpu.matmul %1, %2, %cst {dimension_numbers = #tpu.dot_dimension_numbers<[1], [0], [0], [1], [0, 0, 1, 1], [], []>} : vector<8x32xbf16>, vector<32x128xbf16>, vector<8x128xf32> -> vector<8x128xf32>
    %5 = vector.broadcast %3 : vector<1x128xf32> to vector<8x128xf32>
    %6 = arith.addf %4, %5 : vector<8x128xf32>
    %cst_5 = arith.constant 0.000000e+00 : f32
    %7 = vector.broadcast %cst_5 : f32 to vector<8x128xf32>
    %8 = arith.cmpf ogt, %6, %7 : vector<8x128xf32>
    %cst_6 = arith.constant 0.00999999977 : f32
    %9 = vector.broadcast %cst_6 : f32 to vector<8x128xf32>
    %10 = arith.mulf %9, %6 : vector<8x128xf32>
    %11 = arith.select %8, %6, %10 : vector<8x128xi1>, vector<8x128xf32>
    %12 = arith.truncf %11 : vector<8x128xf32> to vector<8x128xbf16>
    %c0_7 = arith.constant 0 : index
    %c0_8 = arith.constant 0 : index
    %13 = vector.load %arg4[%c0_7, %c0_8] : memref<128x128xbf16, #tpu.memory_space<vmem>>, vector<128x128xbf16>
    %c0_9 = arith.constant 0 : index
    %c0_10 = arith.constant 0 : index
    %14 = vector.load %arg5[%c0_9, %c0_10] : memref<1x128xf32, #tpu.memory_space<vmem>>, vector<1x128xf32>
    %cst_11 = arith.constant dense<0.000000e+00> : vector<8x128xf32>
    %15 = tpu.matmul %12, %13, %cst_11 {dimension_numbers = #tpu.dot_dimension_numbers<[1], [0], [0], [1], [0, 0, 1, 1], [], []>} : vector<8x128xbf16>, vector<128x128xbf16>, vector<8x128xf32> -> vector<8x128xf32>
    %16 = vector.broadcast %14 : vector<1x128xf32> to vector<8x128xf32>
    %17 = arith.addf %15, %16 : vector<8x128xf32>
    %cst_12 = arith.constant 0.000000e+00 : f32
    %18 = vector.broadcast %cst_12 : f32 to vector<8x128xf32>
    %19 = arith.cmpf ogt, %17, %18 : vector<8x128xf32>
    %cst_13 = arith.constant 0.00999999977 : f32
    %20 = vector.broadcast %cst_13 : f32 to vector<8x128xf32>
    %21 = arith.mulf %20, %17 : vector<8x128xf32>
    %22 = arith.select %19, %17, %21 : vector<8x128xi1>, vector<8x128xf32>
    %23 = arith.truncf %22 : vector<8x128xf32> to vector<8x128xbf16>
    %c0_14 = arith.constant 0 : index
    %c0_15 = arith.constant 0 : index
    %24 = vector.load %arg6[%c0_14, %c0_15] : memref<128x128xbf16, #tpu.memory_space<vmem>>, vector<128x128xbf16>
    %c0_16 = arith.constant 0 : index
    %c0_17 = arith.constant 0 : index
    %25 = vector.load %arg7[%c0_16, %c0_17] : memref<1x128xf32, #tpu.memory_space<vmem>>, vector<1x128xf32>
    %cst_18 = arith.constant dense<0.000000e+00> : vector<8x128xf32>
    %26 = tpu.matmul %23, %24, %cst_18 {dimension_numbers = #tpu.dot_dimension_numbers<[1], [0], [0], [1], [0, 0, 1, 1], [], []>} : vector<8x128xbf16>, vector<128x128xbf16>, vector<8x128xf32> -> vector<8x128xf32>
    %27 = vector.broadcast %25 : vector<1x128xf32> to vector<8x128xf32>
    %28 = arith.addf %26, %27 : vector<8x128xf32>
    %c0_19 = arith.constant 0 : index
    %c0_20 = arith.constant 0 : index
    %29 = vector.load %arg8[%c0_19, %c0_20] : memref<8x128xf32, #tpu.memory_space<vmem>>, vector<8x128xf32>
    tpu.vector_store %arg8[%c0_19, %c0_20], %28 {strides = array<i32>} : memref<8x128xf32, #tpu.memory_space<vmem>>, vector<8x128xf32>,
    return
  }
  func.func @transform_0(%arg0: i32) -> (i32, i32) {
    %c0_i32 = arith.constant 0 : i32
    %c0_i32_0 = arith.constant 0 : i32
    return %arg0, %c0_i32 : i32, i32
  }
  func.func @transform_1(%arg0: i32) -> (i32, i32) {
    %c0_i32 = arith.constant 0 : i32
    %c0_i32_0 = arith.constant 0 : i32
    %c0_i32_1 = arith.constant 0 : i32
    return %c0_i32, %c0_i32_0 : i32, i32
  }
  func.func @transform_2(%arg0: i32) -> (i32, i32) {
    %c0_i32 = arith.constant 0 : i32
    %c0_i32_0 = arith.constant 0 : i32
    %c0_i32_1 = arith.constant 0 : i32
    return %c0_i32, %c0_i32_0 : i32, i32
  }
  func.func @transform_3(%arg0: i32) -> (i32, i32) {
    %c0_i32 = arith.constant 0 : i32
    %c0_i32_0 = arith.constant 0 : i32
    %c0_i32_1 = arith.constant 0 : i32
    return %c0_i32, %c0_i32_0 : i32, i32
  }
  func.func @transform_4(%arg0: i32) -> (i32, i32) {
    %c0_i32 = arith.constant 0 : i32
    %c0_i32_0 = arith.constant 0 : i32
    %c0_i32_1 = arith.constant 0 : i32
    return %c0_i32, %c0_i32_0 : i32, i32
  }
  func.func @transform_5(%arg0: i32) -> (i32, i32) {
    %c0_i32 = arith.constant 0 : i32
    %c0_i32_0 = arith.constant 0 : i32
    %c0_i32_1 = arith.constant 0 : i32
    return %c0_i32, %c0_i32_0 : i32, i32
  }
  func.func @transform_6(%arg0: i32) -> (i32, i32) {
    %c0_i32 = arith.constant 0 : i32
    %c0_i32_0 = arith.constant 0 : i32
    %c0_i32_1 = arith.constant 0 : i32
    return %c0_i32, %c0_i32_0 : i32, i32
  }
  func.func @transform_7(%arg0: i32) -> (i32, i32) {
    %c0_i32 = arith.constant 0 : i32
    %c0_i32_0 = arith.constant 0 : i32
    return %arg0, %c0_i32 : i32, i32
  }
}

</mosaic_0001>

<llo_original>
// kernel: latent_classifier_forward.1
$region0: #{latent_classifier_forward.1}
  #allocation0 [shape = 'u32[]', space=smem, size = 0x4, offset = 0x4, fixed_abs, tag = 'smem constant byte address 0x4 - core index']
  #allocation1 [shape = 'u32[144,128]{1,0:T(1,128)}', space=vmem, size = 0x12000, scoped, tag = 'internal scratch']
  %s0 = inlined_call_operand.hbm [shape: f32[8,32], index: 0, kind: input, shape index: {}]
  %s1 = inlined_call_operand.hbm [shape: bf16[32,128], index: 1, kind: input, shape index: {}]
  %s2 = inlined_call_operand.vmem [shape: f32[1,128], index: 2, kind: input, shape index: {}]
  %s3 = inlined_call_operand.hbm [shape: bf16[128,128], index: 3, kind: input, shape index: {}]
  %s4 = inlined_call_operand.vmem [shape: f32[1,128], index: 4, kind: input, shape index: {}]
  %s5 = inlined_call_operand.hbm [shape: bf16[128,128], index: 5, kind: input, shape index: {}]
  %s6 = inlined_call_operand.vmem [shape: f32[1,128], index: 6, kind: input, shape index: {}]
  %s7 = inlined_call_operand.hbm [shape: f32[8,128], index: 7, kind: output, shape index: {}]
  %s8 = sld [smem:[#allocation0]]
  $region54: #{latent_classifier_forward.1} parent=0
    _
  %s10 = ssub.s32 1, %s8
  %s11 = scalar_select 0, %s10, %s8
  $region1: #{latent_classifier_forward.1} parent=0
    #allocation2 [shape = 'u8[4096]{0}', space=vmem, size = 0x1000, scoped, tag = 'input window, operand 0, single buffered']
    #allocation3 [shape = 's32[1]{0}', space=sflag, size = 0x4, scoped, tag = 'scoped memory for latent_classifier_forward.1']
    #allocation4 [shape = 's32[1]{0}', space=sflag, size = 0x4, scoped, tag = 'scoped memory for latent_classifier_forward.1']
    #allocation5 [shape = 'u8[8192]{0}', space=vmem, size = 0x2000, scoped, tag = 'input window, operand 1, single buffered']
    #allocation6 [shape = 's32[1]{0}', space=sflag, size = 0x4, scoped, tag = 'scoped memory for latent_classifier_forward.1']
    #allocation7 [shape = 'u8[32768]{0}', space=vmem, size = 0x8000, scoped, tag = 'input window, operand 3, single buffered']
    #allocation8 [shape = 'u8[32768]{0}', space=vmem, size = 0x8000, scoped, tag = 'input window, operand 5, single buffered']
    #allocation9 [shape = 's32[1]{0}', space=sflag, size = 0x4, scoped, tag = 'scoped memory for latent_classifier_forward.1']
    #allocation10 [shape = 'u8[4096]{0}', space=vmem, size = 0x1000, scoped, tag = 'output window, operand 0, single buffered']
    %12 = vsyncpa [#allocation3], 0
    %13 = vsyncpa [#allocation6], 0
    %14 = vsyncpa [#allocation9], 0
    %15 = vsyncpa [#allocation4], 0
    // Predicated region
    $region2: #{latent_classifier_forward.1} parent=1 // pred_check
      _
    $region3: #{latent_classifier_forward.1} parent=1 // pred_check_branch
      %17 = sbr.rel (0) target = $region5
    $region4: #{latent_classifier_forward.1} parent=1 // pred_region
      %s19 = ssub.s32 128, 128
      %20 = vsyncadd [#allocation3], %s19
      %s22 = sshll.u32 [#allocation2], 4
      %s23 = int_to_ptr.vmem [resolvable:$true] %s22
      %25 = dma.hbm_to_vmem [thread:$0]  %s0, 128, %s23, [#allocation3]
    $region5: #{latent_classifier_forward.1} parent=1 // pred_fallthru
      _
    // Predicated region
    $region6: #{latent_classifier_forward.1} parent=1 // pred_check
      _
    $region7: #{latent_classifier_forward.1} parent=1 // pred_check_branch
      %27 = sbr.rel (0) target = $region9
    $region8: #{latent_classifier_forward.1} parent=1 // pred_region
      %s29 = ssub.s32 256, 256
      %30 = vsyncadd [#allocation6], %s29
      %s31 = sshll.u32 [#allocation5], 4
      %s32 = int_to_ptr.vmem [resolvable:$true] %s31
      %37 = dma.hbm_to_vmem [thread:$0]  %s1, 256, %s32, [#allocation6], 64, 64, 4
    $region9: #{latent_classifier_forward.1} parent=1 // pred_fallthru
      _
    // Predicated region
    $region10: #{latent_classifier_forward.1} parent=1 // pred_check
      _
    $region11: #{latent_classifier_forward.1} parent=1 // pred_check_branch
      %39 = sbr.rel (0) target = $region13
    $region12: #{latent_classifier_forward.1} parent=1 // pred_region
      _
    $region13: #{latent_classifier_forward.1} parent=1 // pred_fallthru
      _
    // Predicated region
    $region14: #{latent_classifier_forward.1} parent=1 // pred_check
      _
    $region15: #{latent_classifier_forward.1} parent=1 // pred_check_branch
      %41 = sbr.rel (0) target = $region17
    $region16: #{latent_classifier_forward.1} parent=1 // pred_region
      %s43 = ssub.s32 1024, 1024
      %44 = vsyncadd [#allocation6], %s43
      %s45 = sshll.u32 [#allocation7], 4
      %s46 = int_to_ptr.vmem [resolvable:$true] %s45
      %51 = dma.hbm_to_vmem [thread:$0]  %s3, 1024, %s46, [#allocation6], 64, 64, 4
    $region17: #{latent_classifier_forward.1} parent=1 // pred_fallthru
      _
    // Predicated region
    $region18: #{latent_classifier_forward.1} parent=1 // pred_check
      _
    $region19: #{latent_classifier_forward.1} parent=1 // pred_check_branch
      %53 = sbr.rel (0) target = $region21
    $region20: #{latent_classifier_forward.1} parent=1 // pred_region
      _
    $region21: #{latent_classifier_forward.1} parent=1 // pred_fallthru
      _
    // Predicated region
    $region22: #{latent_classifier_forward.1} parent=1 // pred_check
      _
    $region23: #{latent_classifier_forward.1} parent=1 // pred_check_branch
      %55 = sbr.rel (0) target = $region25
    $region24: #{latent_classifier_forward.1} parent=1 // pred_region
      %s57 = ssub.s32 1024, 1024
      %58 = vsyncadd [#allocation9], %s57
      %s59 = sshll.u32 [#allocation8], 4
      %s60 = int_to_ptr.vmem [resolvable:$true] %s59
      %65 = dma.hbm_to_vmem [thread:$0]  %s5, 1024, %s60, [#allocation9], 64, 64, 4
    $region25: #{latent_classifier_forward.1} parent=1 // pred_fallthru
      _
    // Predicated region
    $region26: #{latent_classifier_forward.1} parent=1 // pred_check
      _
    $region27: #{latent_classifier_forward.1} parent=1 // pred_check_branch
      %67 = sbr.rel (0) target = $region29
    $region28: #{latent_classifier_forward.1} parent=1 // pred_region
      _
    $region29: #{latent_classifier_forward.1} parent=1 // pred_fallthru
      _
    // Predicated region
    $region30: #{latent_classifier_forward.1} parent=1 // pred_check
      _
    $region31: #{latent_classifier_forward.1} parent=1 // pred_check_branch
      %69 = sbr.rel (0) target = $region33
    $region32: #{latent_classifier_forward.1} parent=1 // pred_region
      %70 = dma.done [#allocation3], 128
    $region33: #{latent_classifier_forward.1} parent=1 // pred_fallthru
      _
    // Predicated region
    $region34: #{latent_classifier_forward.1} parent=1 // pred_check
      _
    $region35: #{latent_classifier_forward.1} parent=1 // pred_check_branch
      %72 = sbr.rel (0) target = $region37
    $region36: #{latent_classifier_forward.1} parent=1 // pred_region
      %73 = dma.done [#allocation6], 256
    $region37: #{latent_classifier_forward.1} parent=1 // pred_fallthru
      _
    // Predicated region
    $region38: #{latent_classifier_forward.1} parent=1 // pred_check
      _
    $region39: #{latent_classifier_forward.1} parent=1 // pred_check_branch
      %75 = sbr.rel (0) target = $region41
    $region40: #{latent_classifier_forward.1} parent=1 // pred_region
      %76 = dma.done [#allocation6], 1024
    $region41: #{latent_classifier_forward.1} parent=1 // pred_fallthru
      _
    // Predicated region
    $region42: #{latent_classifier_forward.1} parent=1 // pred_check
      _
    $region43: #{latent_classifier_forward.1} parent=1 // pred_check_branch
      %78 = sbr.rel (0) target = $region45
    $region44: #{latent_classifier_forward.1} parent=1 // pred_region
      %79 = dma.done [#allocation9], 1024
    $region45: #{latent_classifier_forward.1} parent=1 // pred_fallthru
      _
    %v81 = vld [vmem:[#allocation2] sm:$0xff]
    %v82 = vpack.c.bf16 %v81, %v81
    %v83 = vld [vmem:[#allocation5] sm:$0xf]
    %v84 = vld [vmem:[#allocation5 + $0x4] sm:$0xf]
    %v85 = vld [vmem:[#allocation5 + $0x8] sm:$0xf]
    %v86 = vld [vmem:[#allocation5 + $0xc] sm:$0xf]
    %v87 = vld [vmem:[%s2] sm:$0x1]
    %v89 = vlaneseq
    %v90 = vshrl.u32 %v89, 7
    %v91 = vsub.s32 0, %v90
    %v92 = vrot.slane %v87, %v91
    %v98 = vunpack.c.l.b16 %v83
    %v99 = vunpack.c.l.b16 %v84
    %v100 = vunpack.c.l.b16 %v85
    %v101 = vunpack.c.l.b16 %v86
    %v102 = vpack.c.b16 %v99, %v98
    %v103 = vpack.c.b16 %v101, %v100
    %vm106 = vcmask 261120
    %v108 = vsel %vm106, %v82, 0
    %110 = vmatprep.subr.bf16.mxu0 0
    %111 = vmatpush1.bf16.msra.mxu0 %v102
    %112 = vmatprep.subr.bf16.mxu0 0
    %113 = vmatpush1.bf16.msra.mxu0 %v103
    %114 = vmatprep.subr.bf16.mxu0 0
    %115 = vmatpush1.bf16.msra.mxu0 0
    %116 = vmatprep.subr.bf16.mxu0 0
    %117 = vmatpush1.bf16.msra.mxu0 0
    %118 = vmatprep.subr.bf16.mxu0 0
    %119 = vmatpush1.bf16.msra.mxu0 0
    %120 = vmatprep.subr.bf16.mxu0 0
    %121 = vmatpush1.bf16.msra.mxu0 0
    %122 = vmatprep.subr.bf16.mxu0 0
    %123 = vmatpush1.bf16.msra.mxu0 0
    %124 = vmatprep.subr.bf16.mxu0 0
    %125 = vmatpush1.bf16.msra.mxu0 0
    %126 = vmatprep.subr.bf16.mxu0 0
    %127 = vmatpush1.bf16.msra.mxu0 0
    %128 = vmatprep.subr.bf16.mxu0 0
    %129 = vmatpush1.bf16.msra.mxu0 0
    %130 = vmatprep.subr.bf16.mxu0 0
    %131 = vmatpush1.bf16.msra.mxu0 0
    %132 = vmatprep.subr.bf16.mxu0 0
    %133 = vmatpush1.bf16.msra.mxu0 0
    %134 = vmatprep.subr.bf16.mxu0 0
    %135 = vmatpush1.bf16.msra.mxu0 0
    %136 = vmatprep.subr.bf16.mxu0 0
    %137 = vmatpush1.bf16.msra.mxu0 0
    %138 = vmatprep.subr.bf16.mxu0 0
    %139 = vmatpush1.bf16.msra.mxu0 0
    %140 = vmatprep.subr.bf16.mxu0 0
    %141 = vmatpush1.bf16.msra.mxu0 0
    %142 = vmatprep.mubr.bf16.mxu0 0
    %143 = vmatmul.mubr.bf16.gmra.mrb[0].mxu0 %v108
    %v144 = vpop.f32.mrb[0].mxu0
    %v145 = vadd.f32 %v92, %v144
    %v146 = vpop.f32.mrb[0].mxu0
    %v147 = vpop.f32.mrb[0].mxu0
    %v148 = vpop.f32.mrb[0].mxu0
    %149 = vdwg.mxu0
    %vm150 = vcmp.gt.f32.partialorder %v145, 0.0
    %v151 = vmul.f32 %v145, 0.01
    %v152 = vsel %vm150, %v145, %v151
    %v153 = vpack.c.bf16 %v152, %v152
    %v154 = vld [vmem:[#allocation7] sm:$0xf]
    %v155 = vld [vmem:[#allocation7 + $0x4] sm:$0xf]
    %v156 = vld [vmem:[#allocation7 + $0x8] sm:$0xf]
    %v157 = vld [vmem:[#allocation7 + $0xc] sm:$0xf]
    %v158 = vld [vmem:[#allocation7 + $0x10] sm:$0xf]
    %v159 = vld [vmem:[#allocation7 + $0x14] sm:$0xf]
    %v160 = vld [vmem:[#allocation7 + $0x18] sm:$0xf]
    %v161 = vld [vmem:[#allocation7 + $0x1c] sm:$0xf]
    %v162 = vld [vmem:[#allocation7 + $0x20] sm:$0xf]
    %v163 = vld [vmem:[#allocation7 + $0x24] sm:$0xf]
    %v164 = vld [vmem:[#allocation7 + $0x28] sm:$0xf]
    %v165 = vld [vmem:[#allocation7 + $0x2c] sm:$0xf]
    %v166 = vld [vmem:[#allocation7 + $0x30] sm:$0xf]
    %v167 = vld [vmem:[#allocation7 + $0x34] sm:$0xf]
    %v168 = vld [vmem:[#allocation7 + $0x38] sm:$0xf]
    %v169 = vld [vmem:[#allocation7 + $0x3c] sm:$0xf]
    %v170 = vld [vmem:[%s4] sm:$0x1]
    %v172 = vlaneseq
    %v173 = vshrl.u32 %v172, 7
    %v174 = vsub.s32 0, %v173
    %v175 = vrot.slane %v170, %v174
    %v193 = vunpack.c.l.b16 %v154
    %v194 = vunpack.c.l.b16 %v155
    %v195 = vunpack.c.l.b16 %v156
    %v196 = vunpack.c.l.b16 %v157
    %v197 = vunpack.c.l.b16 %v158
    %v198 = vunpack.c.l.b16 %v159
    %v199 = vunpack.c.l.b16 %v160
    %v200 = vunpack.c.l.b16 %v161
    %v201 = vunpack.c.l.b16 %v162
    %v202 = vunpack.c.l.b16 %v163
    %v203 = vunpack.c.l.b16 %v164
    %v204 = vunpack.c.l.b16 %v165
    %v205 = vunpack.c.l.b16 %v166
    %v206 = vunpack.c.l.b16 %v167
    %v207 = vunpack.c.l.b16 %v168
    %v208 = vunpack.c.l.b16 %v169
    %v209 = vpack.c.b16 %v194, %v193
    %v210 = vpack.c.b16 %v196, %v195
    %v211 = vpack.c.b16 %v198, %v197
    %v212 = vpack.c.b16 %v200, %v199
    %v213 = vpack.c.b16 %v202, %v201
    %v214 = vpack.c.b16 %v204, %v203
    %v215 = vpack.c.b16 %v206, %v205
    %v216 = vpack.c.b16 %v208, %v207
    %225 = vmatprep.subr.bf16.mxu0 0
    %226 = vmatpush1.bf16.msra.mxu0 %v209
    %227 = vmatprep.subr.bf16.mxu0 0
    %228 = vmatpush1.bf16.msra.mxu0 %v210
    %229 = vmatprep.subr.bf16.mxu0 0
    %230 = vmatpush1.bf16.msra.mxu0 %v211
    %231 = vmatprep.subr.bf16.mxu0 0
    %232 = vmatpush1.bf16.msra.mxu0 %v212
    %233 = vmatprep.subr.bf16.mxu0 0
    %234 = vmatpush1.bf16.msra.mxu0 %v213
    %235 = vmatprep.subr.bf16.mxu0 0
    %236 = vmatpush1.bf16.msra.mxu0 %v214
    %237 = vmatprep.subr.bf16.mxu0 0
    %238 = vmatpush1.bf16.msra.mxu0 %v215
    %239 = vmatprep.subr.bf16.mxu0 0
    %240 = vmatpush1.bf16.msra.mxu0 %v216
    %241 = vmatprep.subr.bf16.mxu0 0
    %242 = vmatpush1.bf16.msra.mxu0 0
    %243 = vmatprep.subr.bf16.mxu0 0
    %244 = vmatpush1.bf16.msra.mxu0 0
    %245 = vmatprep.subr.bf16.mxu0 0
    %246 = vmatpush1.bf16.msra.mxu0 0
    %247 = vmatprep.subr.bf16.mxu0 0
    %248 = vmatpush1.bf16.msra.mxu0 0
    %249 = vmatprep.subr.bf16.mxu0 0
    %250 = vmatpush1.bf16.msra.mxu0 0
    %251 = vmatprep.subr.bf16.mxu0 0
    %252 = vmatpush1.bf16.msra.mxu0 0
    %253 = vmatprep.subr.bf16.mxu0 0
    %254 = vmatpush1.bf16.msra.mxu0 0
    %255 = vmatprep.subr.bf16.mxu0 0
    %256 = vmatpush1.bf16.msra.mxu0 0
    %257 = vmatprep.mubr.bf16.mxu0 0
    %258 = vmatmul.mubr.bf16.gmra.mrb[0].mxu0 %v153
    %v259 = vpop.f32.mrb[0].mxu0
    %v260 = vadd.f32 %v175, %v259
    %v261 = vpop.f32.mrb[0].mxu0
    %v262 = vpop.f32.mrb[0].mxu0
    %v263 = vpop.f32.mrb[0].mxu0
    %264 = vdwg.mxu0
    %vm265 = vcmp.gt.f32.partialorder %v260, 0.0
    %v266 = vmul.f32 %v260, 0.01
    %v267 = vsel %vm265, %v260, %v266
    %v268 = vpack.c.bf16 %v267, %v267
    %v269 = vld [vmem:[#allocation8] sm:$0xf]
    %v270 = vld [vmem:[#allocation8 + $0x4] sm:$0xf]
    %v271 = vld [vmem:[#allocation8 + $0x8] sm:$0xf]
    %v272 = vld [vmem:[#allocation8 + $0xc] sm:$0xf]
    %v273 = vld [vmem:[#allocation8 + $0x10] sm:$0xf]
    %v274 = vld [vmem:[#allocation8 + $0x14] sm:$0xf]
    %v275 = vld [vmem:[#allocation8 + $0x18] sm:$0xf]
    %v276 = vld [vmem:[#allocation8 + $0x1c] sm:$0xf]
    %v277 = vld [vmem:[#allocation8 + $0x20] sm:$0xf]
    %v278 = vld [vmem:[#allocation8 + $0x24] sm:$0xf]
    %v279 = vld [vmem:[#allocation8 + $0x28] sm:$0xf]
    %v280 = vld [vmem:[#allocation8 + $0x2c] sm:$0xf]
    %v281 = vld [vmem:[#allocation8 + $0x30] sm:$0xf]
    %v282 = vld [vmem:[#allocation8 + $0x34] sm:$0xf]
    %v283 = vld [vmem:[#allocation8 + $0x38] sm:$0xf]
    %v284 = vld [vmem:[#allocation8 + $0x3c] sm:$0xf]
    %v285 = vld [vmem:[%s6] sm:$0x1]
    %v287 = vlaneseq
    %v288 = vshrl.u32 %v287, 7
    %v289 = vsub.s32 0, %v288
    %v290 = vrot.slane %v285, %v289
    %v308 = vunpack.c.l.b16 %v269
    %v309 = vunpack.c.l.b16 %v270
    %v310 = vunpack.c.l.b16 %v271
    %v311 = vunpack.c.l.b16 %v272
    %v312 = vunpack.c.l.b16 %v273
    %v313 = vunpack.c.l.b16 %v274
    %v314 = vunpack.c.l.b16 %v275
    %v315 = vunpack.c.l.b16 %v276
    %v316 = vunpack.c.l.b16 %v277
    %v317 = vunpack.c.l.b16 %v278
    %v318 = vunpack.c.l.b16 %v279
    %v319 = vunpack.c.l.b16 %v280
    %v320 = vunpack.c.l.b16 %v281
    %v321 = vunpack.c.l.b16 %v282
    %v322 = vunpack.c.l.b16 %v283
    %v323 = vunpack.c.l.b16 %v284
    %v324 = vpack.c.b16 %v309, %v308
    %v325 = vpack.c.b16 %v311, %v310
    %v326 = vpack.c.b16 %v313, %v312
    %v327 = vpack.c.b16 %v315, %v314
    %v328 = vpack.c.b16 %v317, %v316
    %v329 = vpack.c.b16 %v319, %v318
    %v330 = vpack.c.b16 %v321, %v320
    %v331 = vpack.c.b16 %v323, %v322
    %340 = vmatprep.subr.bf16.mxu0 0
    %341 = vmatpush1.bf16.msra.mxu0 %v324
    %342 = vmatprep.subr.bf16.mxu0 0
    %343 = vmatpush1.bf16.msra.mxu0 %v325
    %344 = vmatprep.subr.bf16.mxu0 0
    %345 = vmatpush1.bf16.msra.mxu0 %v326
    %346 = vmatprep.subr.bf16.mxu0 0
    %347 = vmatpush1.bf16.msra.mxu0 %v327
    %348 = vmatprep.subr.bf16.mxu0 0
    %349 = vmatpush1.bf16.msra.mxu0 %v328
    %350 = vmatprep.subr.bf16.mxu0 0
    %351 = vmatpush1.bf16.msra.mxu0 %v329
    %352 = vmatprep.subr.bf16.mxu0 0
    %353 = vmatpush1.bf16.msra.mxu0 %v330
    %354 = vmatprep.subr.bf16.mxu0 0
    %355 = vmatpush1.bf16.msra.mxu0 %v331
    %356 = vmatprep.subr.bf16.mxu0 0
    %357 = vmatpush1.bf16.msra.mxu0 0
    %358 = vmatprep.subr.bf16.mxu0 0
    %359 = vmatpush1.bf16.msra.mxu0 0
    %360 = vmatprep.subr.bf16.mxu0 0
    %361 = vmatpush1.bf16.msra.mxu0 0
    %362 = vmatprep.subr.bf16.mxu0 0
    %363 = vmatpush1.bf16.msra.mxu0 0
    %364 = vmatprep.subr.bf16.mxu0 0
    %365 = vmatpush1.bf16.msra.mxu0 0
    %366 = vmatprep.subr.bf16.mxu0 0
    %367 = vmatpush1.bf16.msra.mxu0 0
    %368 = vmatprep.subr.bf16.mxu0 0
    %369 = vmatpush1.bf16.msra.mxu0 0
    %370 = vmatprep.subr.bf16.mxu0 0
    %371 = vmatpush1.bf16.msra.mxu0 0
    %372 = vmatprep.mubr.bf16.mxu0 0
    %373 = vmatmul.mubr.bf16.gmra.mrb[0].mxu0 %v268
    %v374 = vpop.f32.mrb[0].mxu0
    %v375 = vadd.f32 %v290, %v374
    %v376 = vpop.f32.mrb[0].mxu0
    %v377 = vpop.f32.mrb[0].mxu0
    %v378 = vpop.f32.mrb[0].mxu0
    %379 = vdwg.mxu0
    %380 = vst [vmem:[#allocation10] sm:$0xff] %v375
    // Predicated region
    $region46: #{latent_classifier_forward.1} parent=1 // pred_check
      _
    $region47: #{latent_classifier_forward.1} parent=1 // pred_check_branch
      %382 = sbr.rel (0) target = $region49
    $region48: #{latent_classifier_forward.1} parent=1 // pred_region
      %s384 = ssub.s32 128, 128
      %385 = vsyncadd [#allocation4], %s384
      %s387 = sshll.u32 [#allocation10], 4
      %s388 = int_to_ptr.vmem [resolvable:$true] %s387
      %390 = dma.vmem_to_hbm [thread:$0]  %s388, 128, %s7, [#allocation4]
    $region49: #{latent_classifier_forward.1} parent=1 // pred_fallthru
      _
    // Predicated region
    $region50: #{latent_classifier_forward.1} parent=1 // pred_check
      _
    $region51: #{latent_classifier_forward.1} parent=1 // pred_check_branch
      %392 = sbr.rel (0) target = $region53
    $region52: #{latent_classifier_forward.1} parent=1 // pred_region
      %393 = dma.done [#allocation4], 128
    $region53: #{latent_classifier_forward.1} parent=1 // pred_fallthru
      _
    %394 = vsyncpa [#allocation3], 1
    %395 = vsyncpa [#allocation6], 1
    %396 = vsyncpa [#allocation9], 1
    %397 = vsyncpa [#allocation4], 1

// kernel: latent_classifier_forward.1
$region0: #{latent_classifier_forward.1}
  #allocation0 [shape = 'u32[]', space=smem, size = 0x4, offset = 0x4, fixed_abs, tag = 'smem constant byte address 0x4 - core index']
  #allocation1 [shape = 'u32[144,128]{1,0:T(1,128)}', space=vmem, size = 0x12000, scoped, tag = 'internal scratch']
  %s0 = inlined_call_operand.hbm [shape: f32[8,32], index: 0, kind: input, shape index: {}]
  %s1 = inlined_call_operand.hbm [shape: bf16[32,128], index: 1, kind: input, shape index: {}]
  %s2 = inlined_call_operand.vmem [shape: f32[1,128], index: 2, kind: input, shape index: {}]
  %s3 = inlined_call_operand.hbm [shape: bf16[128,128], index: 3, kind: input, shape index: {}]
  %s4 = inlined_call_operand.vmem [shape: f32[1,128], index: 4, kind: input, shape index: {}]
  %s5 = inlined_call_operand.hbm [shape: bf16[128,128], index: 5, kind: input, shape index: {}]
  %s6 = inlined_call_operand.vmem [shape: f32[1,128], index: 6, kind: input, shape index: {}]
  %s7 = inlined_call_operand.hbm [shape: f32[8,128], index: 7, kind: output, shape index: {}]
  %s8 = sld [smem:[#allocation0]]
  $region54: #{latent_classifier_forward.1} parent=0
    _
  %s10 = ssub.s32 1, %s8
  %s11 = scalar_select 0, %s10, %s8
  $region1: #{latent_classifier_forward.1} parent=0
    #allocation2 [shape = 'u8[4096]{0}', space=vmem, size = 0x1000, scoped, tag = 'input window, operand 0, single buffered']
    #allocation3 [shape = 's32[1]{0}', space=sflag, size = 0x4, scoped, tag = 'scoped memory for latent_classifier_forward.1']
    #allocation4 [shape = 's32[1]{0}', space=sflag, size = 0x4, scoped, tag = 'scoped memory for latent_classifier_forward.1']
    #allocation5 [shape = 'u8[8192]{0}', space=vmem, size = 0x2000, scoped, tag = 'input window, operand 1, single buffered']
    #allocation6 [shape = 's32[1]{0}', space=sflag, size = 0x4, scoped, tag = 'scoped memory for latent_classifier_forward.1']
    #allocation7 [shape = 'u8[32768]{0}', space=vmem, size = 0x8000, scoped, tag = 'input window, operand 3, single buffered']
    #allocation8 [shape = 'u8[32768]{0}', space=vmem, size = 0x8000, scoped, tag = 'input window, operand 5, single buffered']
    #allocation9 [shape = 's32[1]{0}', space=sflag, size = 0x4, scoped, tag = 'scoped memory for latent_classifier_forward.1']
    #allocation10 [shape = 'u8[4096]{0}', space=vmem, size = 0x1000, scoped, tag = 'output window, operand 0, single buffered']
    %12 = vsyncpa [#allocation3], 0
    %13 = vsyncpa [#allocation6], 0
    %14 = vsyncpa [#allocation9], 0
    %15 = vsyncpa [#allocation4], 0
    // Predicated region
    $region2: #{latent_classifier_forward.1} parent=1 // pred_check
      _
    $region3: #{latent_classifier_forward.1} parent=1 // pred_check_branch
      %17 = sbr.rel (0) target = $region5
    $region4: #{latent_classifier_forward.1} parent=1 // pred_region
      %s19 = ssub.s32 128, 128
      %20 = vsyncadd [#allocation3], %s19
      %s22 = sshll.u32 [#allocation2], 4
      %s23 = int_to_ptr.vmem [resolvable:$true] %s22
      %25 = dma.hbm_to_vmem [thread:$0]  %s0, 128, %s23, [#allocation3]
    $region5: #{latent_classifier_forward.1} parent=1 // pred_fallthru
      _
    // Predicated region
    $region6: #{latent_classifier_forward.1} parent=1 // pred_check
      _
    $region7: #{latent_classifier_forward.1} parent=1 // pred_check_branch
      %27 = sbr.rel (0) target = $region9
    $region8: #{latent_classifier_forward.1} parent=1 // pred_region
      %s29 = ssub.s32 256, 256
      %30 = vsyncadd [#allocation6], %s29
      %s31 = sshll.u32 [#allocation5], 4
      %s32 = int_to_ptr.vmem [resolvable:$true] %s31
      %37 = dma.hbm_to_vmem [thread:$0]  %s1, 256, %s32, [#allocation6], 64, 64, 4
    $region9: #{latent_classifier_forward.1} parent=1 // pred_fallthru
      _
    // Predicated region
    $region10: #{latent_classifier_forward.1} parent=1 // pred_check
      _
    $region11: #{latent_classifier_forward.1} parent=1 // pred_check_branch
      %39 = sbr.rel (0) target = $region13
    $region12: #{latent_classifier_forward.1} parent=1 // pred_region
      _
    $region13: #{latent_classifier_forward.1} parent=1 // pred_fallthru
      _
    // Predicated region
    $region14: #{latent_classifier_forward.1} parent=1 // pred_check
      _
    $region15: #{latent_classifier_forward.1} parent=1 // pred_check_branch
      %41 = sbr.rel (0) target = $region17
    $region16: #{latent_classifier_forward.1} parent=1 // pred_region
      %s43 = ssub.s32 1024, 1024
      %44 = vsyncadd [#allocation6], %s43
      %s45 = sshll.u32 [#allocation7], 4
      %s46 = int_to_ptr.vmem [resolvable:$true] %s45
      %51 = dma.hbm_to_vmem [thread:$0]  %s3, 1024, %s46, [#allocation6], 64, 64, 4
    $region17: #{latent_classifier_forward.1} parent=1 // pred_fallthru
      _
    // Predicated region
    $region18: #{latent_classifier_forward.1} parent=1 // pred_check
      _
    $region19: #{latent_classifier_forward.1} parent=1 // pred_check_branch
      %53 = sbr.rel (0) target = $region21
    $region20: #{latent_classifier_forward.1} parent=1 // pred_region
      _
    $region21: #{latent_classifier_forward.1} parent=1 // pred_fallthru
      _
    // Predicated region
    $region22: #{latent_classifier_forward.1} parent=1 // pred_check
      _
    $region23: #{latent_classifier_forward.1} parent=1 // pred_check_branch
      %55 = sbr.rel (0) target = $region25
    $region24: #{latent_classifier_forward.1} parent=1 // pred_region
      %s57 = ssub.s32 1024, 1024
      %58 = vsyncadd [#allocation9], %s57
      %s59 = sshll.u32 [#allocation8], 4
      %s60 = int_to_ptr.vmem [resolvable:$true] %s59
      %65 = dma.hbm_to_vmem [thread:$0]  %s5, 1024, %s60, [#allocation9], 64, 64, 4
    $region25: #{latent_classifier_forward.1} parent=1 // pred_fallthru
      _
    // Predicated region
    $region26: #{latent_classifier_forward.1} parent=1 // pred_check
      _
    $region27: #{latent_classifier_forward.1} parent=1 // pred_check_branch
      %67 = sbr.rel (0) target = $region29
    $region28: #{latent_classifier_forward.1} parent=1 // pred_region
      _
    $region29: #{latent_classifier_forward.1} parent=1 // pred_fallthru
      _
    // Predicated region
    $region30: #{latent_classifier_forward.1} parent=1 // pred_check
      _
    $region31: #{latent_classifier_forward.1} parent=1 // pred_check_branch
      %69 = sbr.rel (0) target = $region33
    $region32: #{latent_classifier_forward.1} parent=1 // pred_region
      %70 = dma.done [#allocation3], 128
    $region33: #{latent_classifier_forward.1} parent=1 // pred_fallthru
      _
    // Predicated region
    $region34: #{latent_classifier_forward.1} parent=1 // pred_check
      _
    $region35: #{latent_classifier_forward.1} parent=1 // pred_check_branch
      %72 = sbr.rel (0) target = $region37
    $region36: #{latent_classifier_forward.1} parent=1 // pred_region
      %73 = dma.done [#allocation6], 256
    $region37: #{latent_classifier_forward.1} parent=1 // pred_fallthru
      _
    // Predicated region
    $region38: #{latent_classifier_forward.1} parent=1 // pred_check
      _
    $region39: #{latent_classifier_forward.1} parent=1 // pred_check_branch
      %75 = sbr.rel (0) target = $region41
    $region40: #{latent_classifier_forward.1} parent=1 // pred_region
      %76 = dma.done [#allocation6], 1024
    $region41: #{latent_classifier_forward.1} parent=1 // pred_fallthru
      _
    // Predicated region
    $region42: #{latent_classifier_forward.1} parent=1 // pred_check
      _
    $region43: #{latent_classifier_forward.1} parent=1 // pred_check_branch
      %78 = sbr.rel (0) target = $region45
    $region44: #{latent_classifier_forward.1} parent=1 // pred_region
      %79 = dma.done [#allocation9], 1024
    $region45: #{latent_classifier_forward.1} parent=1 // pred_fallthru
      _
    %v81 = vld [vmem:[#allocation2] sm:$0xff]
    %v82 = vpack.c.bf16 %v81, %v81
    %v83 = vld [vmem:[#allocation5] sm:$0xf]
    %v84 = vld [vmem:[#allocation5 + $0x4] sm:$0xf]
    %v85 = vld [vmem:[#allocation5 + $0x8] sm:$0xf]
    %v86 = vld [vmem:[#allocation5 + $0xc] sm:$0xf]
    %v87 = vld [vmem:[%s2] sm:$0x1]
    %v89 = vlaneseq
    %v90 = vshrl.u32 %v89, 7
    %v91 = vsub.s32 0, %v90
    %v92 = vrot.slane %v87, %v91
    %v98 = vunpack.c.l.b16 %v83
    %v99 = vunpack.c.l.b16 %v84
    %v100 = vunpack.c.l.b16 %v85
    %v101 = vunpack.c.l.b16 %v86
    %v102 = vpack.c.b16 %v99, %v98
    %v103 = vpack.c.b16 %v101, %v100
    %vm106 = vcmask 261120
    %v108 = vsel %vm106, %v82, 0
    %110 = vmatprep.subr.bf16.mxu0 0
    %111 = vmatpush1.bf16.msra.mxu0 %v102
    %112 = vmatprep.subr.bf16.mxu0 0
    %113 = vmatpush1.bf16.msra.mxu0 %v103
    %114 = vmatprep.subr.bf16.mxu0 0
    %115 = vmatpush1.bf16.msra.mxu0 0
    %116 = vmatprep.subr.bf16.mxu0 0
    %117 = vmatpush1.bf16.msra.mxu0 0
    %118 = vmatprep.subr.bf16.mxu0 0
    %119 = vmatpush1.bf16.msra.mxu0 0
    %120 = vmatprep.subr.bf16.mxu0 0
    %121 = vmatpush1.bf16.msra.mxu0 0
    %122 = vmatprep.subr.bf16.mxu0 0
    %123 = vmatpush1.bf16.msra.mxu0 0
    %124 = vmatprep.subr.bf16.mxu0 0
    %125 = vmatpush1.bf16.msra.mxu0 0
    %126 = vmatprep.subr.bf16.mxu0 0
    %127 = vmatpush1.bf16.msra.mxu0 0
    %128 = vmatprep.subr.bf16.mxu0 0
    %129 = vmatpush1.bf16.msra.mxu0 0
    %130 = vmatprep.subr.bf16.mxu0 0
    %131 = vmatpush1.bf16.msra.mxu0 0
    %132 = vmatprep.subr.bf16.mxu0 0
    %133 = vmatpush1.bf16.msra.mxu0 0
    %134 = vmatprep.subr.bf16.mxu0 0
    %135 = vmatpush1.bf16.msra.mxu0 0
    %136 = vmatprep.subr.bf16.mxu0 0
    %137 = vmatpush1.bf16.msra.mxu0 0
    %138 = vmatprep.subr.bf16.mxu0 0
    %139 = vmatpush1.bf16.msra.mxu0 0
    %140 = vmatprep.subr.bf16.mxu0 0
    %141 = vmatpush1.bf16.msra.mxu0 0
    %142 = vmatprep.mubr.bf16.mxu0 0
    %143 = vmatmul.mubr.bf16.gmra.mrb[0].mxu0 %v108
    %v144 = vpop.f32.mrb[0].mxu0
    %v145 = vadd.f32 %v92, %v144
    %v146 = vpop.f32.mrb[0].mxu0
    %v147 = vpop.f32.mrb[0].mxu0
    %v148 = vpop.f32.mrb[0].mxu0
    %149 = vdwg.mxu0
    %vm150 = vcmp.gt.f32.partialorder %v145, 0.0
    %v151 = vmul.f32 %v145, 0.01
    %v152 = vsel %vm150, %v145, %v151
    %v153 = vpack.c.bf16 %v152, %v152
    %v154 = vld [vmem:[#allocation7] sm:$0xf]
    %v155 = vld [vmem:[#allocation7 + $0x4] sm:$0xf]
    %v156 = vld [vmem:[#allocation7 + $0x8] sm:$0xf]
    %v157 = vld [vmem:[#allocation7 + $0xc] sm:$0xf]
    %v158 = vld [vmem:[#allocation7 + $0x10] sm:$0xf]
    %v159 = vld [vmem:[#allocation7 + $0x14] sm:$0xf]
    %v160 = vld [vmem:[#allocation7 + $0x18] sm:$0xf]
    %v161 = vld [vmem:[#allocation7 + $0x1c] sm:$0xf]
    %v162 = vld [vmem:[#allocation7 + $0x20] sm:$0xf]
    %v163 = vld [vmem:[#allocation7 + $0x24] sm:$0xf]
    %v164 = vld [vmem:[#allocation7 + $0x28] sm:$0xf]
    %v165 = vld [vmem:[#allocation7 + $0x2c] sm:$0xf]
    %v166 = vld [vmem:[#allocation7 + $0x30] sm:$0xf]
    %v167 = vld [vmem:[#allocation7 + $0x34] sm:$0xf]
    %v168 = vld [vmem:[#allocation7 + $0x38] sm:$0xf]
    %v169 = vld [vmem:[#allocation7 + $0x3c] sm:$0xf]
    %v170 = vld [vmem:[%s4] sm:$0x1]
    %v172 = vlaneseq
    %v173 = vshrl.u32 %v172, 7
    %v174 = vsub.s32 0, %v173
    %v175 = vrot.slane %v170, %v174
    %v193 = vunpack.c.l.b16 %v154
    %v194 = vunpack.c.l.b16 %v155
    %v195 = vunpack.c.l.b16 %v156
    %v196 = vunpack.c.l.b16 %v157
    %v197 = vunpack.c.l.b16 %v158
    %v198 = vunpack.c.l.b16 %v159
    %v199 = vunpack.c.l.b16 %v160
    %v200 = vunpack.c.l.b16 %v161
    %v201 = vunpack.c.l.b16 %v162
    %v202 = vunpack.c.l.b16 %v163
    %v203 = vunpack.c.l.b16 %v164
    %v204 = vunpack.c.l.b16 %v165
    %v205 = vunpack.c.l.b16 %v166
    %v206 = vunpack.c.l.b16 %v167
    %v207 = vunpack.c.l.b16 %v168
    %v208 = vunpack.c.l.b16 %v169
    %v209 = vpack.c.b16 %v194, %v193
    %v210 = vpack.c.b16 %v196, %v195
    %v211 = vpack.c.b16 %v198, %v197
    %v212 = vpack.c.b16 %v200, %v199
    %v213 = vpack.c.b16 %v202, %v201
    %v214 = vpack.c.b16 %v204, %v203
    %v215 = vpack.c.b16 %v206, %v205
    %v216 = vpack.c.b16 %v208, %v207
    %225 = vmatprep.subr.bf16.mxu0 0
    %226 = vmatpush1.bf16.msra.mxu0 %v209
    %227 = vmatprep.subr.bf16.mxu0 0
    %228 = vmatpush1.bf16.msra.mxu0 %v210
    %229 = vmatprep.subr.bf16.mxu0 0
    %230 = vmatpush1.bf16.msra.mxu0 %v211
    %231 = vmatprep.subr.bf16.mxu0 0
    %232 = vmatpush1.bf16.msra.mxu0 %v212
    %233 = vmatprep.subr.bf16.mxu0 0
    %234 = vmatpush1.bf16.msra.mxu0 %v213
    %235 = vmatprep.subr.bf16.mxu0 0
    %236 = vmatpush1.bf16.msra.mxu0 %v214
    %237 = vmatprep.subr.bf16.mxu0 0
    %238 = vmatpush1.bf16.msra.mxu0 %v215
    %239 = vmatprep.subr.bf16.mxu0 0
    %240 = vmatpush1.bf16.msra.mxu0 %v216
    %241 = vmatprep.subr.bf16.mxu0 0
    %242 = vmatpush1.bf16.msra.mxu0 0
    %243 = vmatprep.subr.bf16.mxu0 0
    %244 = vmatpush1.bf16.msra.mxu0 0
    %245 = vmatprep.subr.bf16.mxu0 0
    %246 = vmatpush1.bf16.msra.mxu0 0
    %247 = vmatprep.subr.bf16.mxu0 0
    %248 = vmatpush1.bf16.msra.mxu0 0
    %249 = vmatprep.subr.bf16.mxu0 0
    %250 = vmatpush1.bf16.msra.mxu0 0
    %251 = vmatprep.subr.bf16.mxu0 0
    %252 = vmatpush1.bf16.msra.mxu0 0
    %253 = vmatprep.subr.bf16.mxu0 0
    %254 = vmatpush1.bf16.msra.mxu0 0
    %255 = vmatprep.subr.bf16.mxu0 0
    %256 = vmatpush1.bf16.msra.mxu0 0
    %257 = vmatprep.mubr.bf16.mxu0 0
    %258 = vmatmul.mubr.bf16.gmra.mrb[0].mxu0 %v153
    %v259 = vpop.f32.mrb[0].mxu0
    %v260 = vadd.f32 %v175, %v259
    %v261 = vpop.f32.mrb[0].mxu0
    %v262 = vpop.f32.mrb[0].mxu0
    %v263 = vpop.f32.mrb[0].mxu0
    %264 = vdwg.mxu0
    %vm265 = vcmp.gt.f32.partialorder %v260, 0.0
    %v266 = vmul.f32 %v260, 0.01
    %v267 = vsel %vm265, %v260, %v266
    %v268 = vpack.c.bf16 %v267, %v267
    %v269 = vld [vmem:[#allocation8] sm:$0xf]
    %v270 = vld [vmem:[#allocation8 + $0x4] sm:$0xf]
    %v271 = vld [vmem:[#allocation8 + $0x8] sm:$0xf]
    %v272 = vld [vmem:[#allocation8 + $0xc] sm:$0xf]
    %v273 = vld [vmem:[#allocation8 + $0x10] sm:$0xf]
    %v274 = vld [vmem:[#allocation8 + $0x14] sm:$0xf]
    %v275 = vld [vmem:[#allocation8 + $0x18] sm:$0xf]
    %v276 = vld [vmem:[#allocation8 + $0x1c] sm:$0xf]
    %v277 = vld [vmem:[#allocation8 + $0x20] sm:$0xf]
    %v278 = vld [vmem:[#allocation8 + $0x24] sm:$0xf]
    %v279 = vld [vmem:[#allocation8 + $0x28] sm:$0xf]
    %v280 = vld [vmem:[#allocation8 + $0x2c] sm:$0xf]
    %v281 = vld [vmem:[#allocation8 + $0x30] sm:$0xf]
    %v282 = vld [vmem:[#allocation8 + $0x34] sm:$0xf]
    %v283 = vld [vmem:[#allocation8 + $0x38] sm:$0xf]
    %v284 = vld [vmem:[#allocation8 + $0x3c] sm:$0xf]
    %v285 = vld [vmem:[%s6] sm:$0x1]
    %v287 = vlaneseq
    %v288 = vshrl.u32 %v287, 7
    %v289 = vsub.s32 0, %v288
    %v290 = vrot.slane %v285, %v289
    %v308 = vunpack.c.l.b16 %v269
    %v309 = vunpack.c.l.b16 %v270
    %v310 = vunpack.c.l.b16 %v271
    %v311 = vunpack.c.l.b16 %v272
    %v312 = vunpack.c.l.b16 %v273
    %v313 = vunpack.c.l.b16 %v274
    %v314 = vunpack.c.l.b16 %v275
    %v315 = vunpack.c.l.b16 %v276
    %v316 = vunpack.c.l.b16 %v277
    %v317 = vunpack.c.l.b16 %v278
    %v318 = vunpack.c.l.b16 %v279
    %v319 = vunpack.c.l.b16 %v280
    %v320 = vunpack.c.l.b16 %v281
    %v321 = vunpack.c.l.b16 %v282
    %v322 = vunpack.c.l.b16 %v283
    %v323 = vunpack.c.l.b16 %v284
    %v324 = vpack.c.b16 %v309, %v308
    %v325 = vpack.c.b16 %v311, %v310
    %v326 = vpack.c.b16 %v313, %v312
    %v327 = vpack.c.b16 %v315, %v314
    %v328 = vpack.c.b16 %v317, %v316
    %v329 = vpack.c.b16 %v319, %v318
    %v330 = vpack.c.b16 %v321, %v320
    %v331 = vpack.c.b16 %v323, %v322
    %340 = vmatprep.subr.bf16.mxu0 0
    %341 = vmatpush1.bf16.msra.mxu0 %v324
    %342 = vmatprep.subr.bf16.mxu0 0
    %343 = vmatpush1.bf16.msra.mxu0 %v325
    %344 = vmatprep.subr.bf16.mxu0 0
    %345 = vmatpush1.bf16.msra.mxu0 %v326
    %346 = vmatprep.subr.bf16.mxu0 0
    %347 = vmatpush1.bf16.msra.mxu0 %v327
    %348 = vmatprep.subr.bf16.mxu0 0
    %349 = vmatpush1.bf16.msra.mxu0 %v328
    %350 = vmatprep.subr.bf16.mxu0 0
    %351 = vmatpush1.bf16.msra.mxu0 %v329
    %352 = vmatprep.subr.bf16.mxu0 0
    %353 = vmatpush1.bf16.msra.mxu0 %v330
    %354 = vmatprep.subr.bf16.mxu0 0
    %355 = vmatpush1.bf16.msra.mxu0 %v331
    %356 = vmatprep.subr.bf16.mxu0 0
    %357 = vmatpush1.bf16.msra.mxu0 0
    %358 = vmatprep.subr.bf16.mxu0 0
    %359 = vmatpush1.bf16.msra.mxu0 0
    %360 = vmatprep.subr.bf16.mxu0 0
    %361 = vmatpush1.bf16.msra.mxu0 0
    %362 = vmatprep.subr.bf16.mxu0 0
    %363 = vmatpush1.bf16.msra.mxu0 0
    %364 = vmatprep.subr.bf16.mxu0 0
    %365 = vmatpush1.bf16.msra.mxu0 0
    %366 = vmatprep.subr.bf16.mxu0 0
    %367 = vmatpush1.bf16.msra.mxu0 0
    %368 = vmatprep.subr.bf16.mxu0 0
    %369 = vmatpush1.bf16.msra.mxu0 0
    %370 = vmatprep.subr.bf16.mxu0 0
    %371 = vmatpush1.bf16.msra.mxu0 0
    %372 = vmatprep.mubr.bf16.mxu0 0
    %373 = vmatmul.mubr.bf16.gmra.mrb[0].mxu0 %v268
    %v374 = vpop.f32.mrb[0].mxu0
    %v375 = vadd.f32 %v290, %v374
    %v376 = vpop.f32.mrb[0].mxu0
    %v377 = vpop.f32.mrb[0].mxu0
    %v378 = vpop.f32.mrb[0].mxu0
    %379 = vdwg.mxu0
    %380 = vst [vmem:[#allocation10] sm:$0xff] %v375
    // Predicated region
    $region46: #{latent_classifier_forward.1} parent=1 // pred_check
      _
    $region47: #{latent_classifier_forward.1} parent=1 // pred_check_branch
      %382 = sbr.rel (0) target = $region49
    $region48: #{latent_classifier_forward.1} parent=1 // pred_region
      %s384 = ssub.s32 128, 128
      %385 = vsyncadd [#allocation4], %s384
      %s387 = sshll.u32 [#allocation10], 4
      %s388 = int_to_ptr.vmem [resolvable:$true] %s387
      %390 = dma.vmem_to_hbm [thread:$0]  %s388, 128, %s7, [#allocation4]
    $region49: #{latent_classifier_forward.1} parent=1 // pred_fallthru
      _
    // Predicated region
    $region50: #{latent_classifier_forward.1} parent=1 // pred_check
      _
    $region51: #{latent_classifier_forward.1} parent=1 // pred_check_branch
      %392 = sbr.rel (0) target = $region53
    $region52: #{latent_classifier_forward.1} parent=1 // pred_region
      %393 = dma.done [#allocation4], 128
    $region53: #{latent_classifier_forward.1} parent=1 // pred_fallthru
      _
    %394 = vsyncpa [#allocation3], 1
    %395 = vsyncpa [#allocation6], 1
    %396 = vsyncpa [#allocation9], 1
    %397 = vsyncpa [#allocation4], 1

</llo_original>
